<compile_context>
chip_gen: v6e
topology: v6e:2x2x1
jax: 0.10.0
libtpu: 0.0.40
codegen_flags: <defaults>
</compile_context>

<pallas_src>
import jax
import jax.numpy as jnp
from jax import lax
from jax.experimental import pallas as pl
from jax.experimental.pallas import tpu as pltpu

_EPS = 1e-12            # torch.nn.functional.normalize default eps
_EPS2 = _EPS * _EPS     # compared against squared norms

_LANE = 128
_MAX_LANES_PER_TILE = 8192
_TILE_BYTE_BUDGET = 2 * 1024 * 1024   # per-input tile; 2 inputs x 2 pipeline
                                      # buffers => <= 8 MiB, fits the default
                                      # scoped VMEM limit on v5e/v6e/v7x.


def _cos_partial_kernel(x_ref, y_ref, o_ref):
    """Accumulate per-position cosine similarity into the per-batch
    lane-dense partial-sum block o_ref of shape (1, 1, T)."""

    @pl.when(pl.program_id(1) == 0)
    def _():
        o_ref[...] = jnp.zeros_like(o_ref)

    x = x_ref[...].astype(jnp.float32)   # (1, C, T)
    y = y_ref[...].astype(jnp.float32)   # (1, C, T)

    dots = jnp.sum(x * y, axis=1, keepdims=True)   # (1, 1, T)
    x_sq = jnp.sum(x * x, axis=1, keepdims=True)
    y_sq = jnp.sum(y * y, axis=1, keepdims=True)

    # 1 / (max(||x||, eps) * max(||y||, eps)) via EUP rsqrt.
    inv = lax.rsqrt(jnp.maximum(x_sq, _EPS2)) * lax.rsqrt(jnp.maximum(y_sq, _EPS2))

    o_ref[...] += dots * inv


def cosine_similarity_loss(x, y):
    """x, y: (B, C, ...) arrays (channel axis = 1). Returns scalar 1 - mean(cos)."""
    assert x.shape == y.shape
    b, c = x.shape[0], x.shape[1]
    s = 1
    for d in x.shape[2:]:
        s *= d
    s = max(s, 1)

    # Free reshape: channels on sublanes, spatial positions on lanes.
    x3 = x.reshape(b, c, s)
    y3 = y.reshape(b, c, s)

    # Lane tile: as large as possible subject to the per-tile VMEM budget.
    itemsize = jnp.dtype(x.dtype).itemsize
    cap = max(_LANE, (_TILE_BYTE_BUDGET // (c * itemsize)) // _LANE * _LANE)
    t = min(_MAX_LANES_PER_TILE, cap, pl.cdiv(s, _LANE) * _LANE)
    s_pad = pl.cdiv(s, t) * t
    if s_pad != s:
        pad = ((0, 0), (0, 0), (0, s_pad - s))
        x3 = jnp.pad(x3, pad)   # zero padding contributes exactly 0 cosine
        y3 = jnp.pad(y3, pad)

    grid = (b, s_pad // t)

    partials = pl.pallas_call(
        _cos_partial_kernel,
        out_shape=jax.ShapeDtypeStruct((b, 1, t), jnp.float32),
        grid_spec=pltpu.PrefetchScalarGridSpec(
            num_scalar_prefetch=0,
            grid=grid,
            in_specs=[
                pl.BlockSpec((1, c, t), lambda i, j: (i, 0, j)),
                pl.BlockSpec((1, c, t), lambda i, j: (i, 0, j)),
            ],
            out_specs=pl.BlockSpec((1, 1, t), lambda i, j: (i, 0, 0)),
        ),
        compiler_params=pltpu.CompilerParams(
            dimension_semantics=("parallel", "arbitrary"),
        ),
    )(x3, y3)

    # Tiny (B, 1, T) epilogue reduction handled by XLA.
    mean_cos = jnp.sum(partials, dtype=jnp.float32) / jnp.float32(b * s)
    return jnp.float32(1.0) - mean_cos


def _reference_loss(x, y):
    """Pure-JAX reference mirroring the PyTorch module."""
    xn = x / jnp.maximum(jnp.linalg.norm(x, axis=1, keepdims=True), _EPS)
    yn = y / jnp.maximum(jnp.linalg.norm(y, axis=1, keepdims=True), _EPS)
    cos = jnp.sum(xn * yn, axis=1)
    return 1.0 - jnp.mean(cos)


if __name__ == "__main__":
    key = jax.random.PRNGKey(0)
    kx, ky = jax.random.split(key)

    # NCHW inputs, consistent with the PyTorch module's dim=1 convention.
    x = jax.random.normal(kx, (2, 4, 16, 16), dtype=jnp.float32)
    y = jax.random.normal(ky, (2, 4, 16, 16), dtype=jnp.float32)

    loss = jax.block_until_ready(cosine_similarity_loss(x, y))
    ref = jax.block_until_ready(_reference_loss(x, y))

    assert jnp.allclose(loss, ref, atol=1e-5, rtol=1e-5), (loss, ref)
    print("KERNEL_OK")
</pallas_src>

<mosaic_0001>
module attributes {stable_mosaic.version = 11 : i64} {
  func.func @_cos_partial_kernel(%arg0: i32, %arg1: i32, %arg2: memref<1x4x256xf32, #tpu.memory_space<vmem>>, %arg3: memref<1x4x256xf32, #tpu.memory_space<vmem>>, %arg4: memref<1x1x256xf32, #tpu.memory_space<vmem>>) attributes {dimension_semantics = [#tpu.dimension_semantics<parallel>, #tpu.dimension_semantics<arbitrary>], iteration_bounds = array<i64: 2, 1>, scalar_prefetch = 0 : i64, scratch_operands = 0 : i64, tpu.core_type = #tpu.core_type<tc>, window_params = [{transform_indices = @transform_0, window_bounds = array<i64: 1, 4, 256>}, {transform_indices = @transform_1, window_bounds = array<i64: 1, 4, 256>}, {transform_indices = @transform_2, window_bounds = array<i64: 1, 1, 256>}]} {
    %c0_i32 = arith.constant 0 : i32
    %0 = arith.cmpi eq, %arg1, %c0_i32 : i32
    %1 = arith.extui %0 : i1 to i32
    %c0_i32_0 = arith.constant 0 : i32
    %2 = arith.cmpi ne, %1, %c0_i32_0 : i32
    scf.if %2 {
      %cst_16 = arith.constant 0.000000e+00 : f32
      %25 = vector.broadcast %cst_16 : f32 to vector<1x1x256xf32>
      %c0_17 = arith.constant 0 : index
      %c0_18 = arith.constant 0 : index
      %c0_19 = arith.constant 0 : index
      %26 = vector.load %arg4[%c0_17, %c0_18, %c0_19] : memref<1x1x256xf32, #tpu.memory_space<vmem>>, vector<1x1x256xf32>
      tpu.vector_store %arg4[%c0_17, %c0_18, %c0_19], %25 {strides = array<i32>} : memref<1x1x256xf32, #tpu.memory_space<vmem>>, vector<1x1x256xf32>,
    } else {
    }
    %c0 = arith.constant 0 : index
    %c0_1 = arith.constant 0 : index
    %c0_2 = arith.constant 0 : index
    %3 = vector.load %arg2[%c0, %c0_1, %c0_2] : memref<1x4x256xf32, #tpu.memory_space<vmem>>, vector<1x4x256xf32>
    %c0_3 = arith.constant 0 : index
    %c0_4 = arith.constant 0 : index
    %c0_5 = arith.constant 0 : index
    %4 = vector.load %arg3[%c0_3, %c0_4, %c0_5] : memref<1x4x256xf32, #tpu.memory_space<vmem>>, vector<1x4x256xf32>
    %5 = arith.mulf %3, %4 : vector<1x4x256xf32>
    %cst = arith.constant dense<0.000000e+00> : vector<1x256xf32>
    %6 = vector.multi_reduction <add>, %5, %cst [1] : vector<1x4x256xf32> to vector<1x256xf32>
    %7 = vector.shape_cast %6 : vector<1x256xf32> to vector<1x1x256xf32>
    %8 = arith.mulf %3, %3 : vector<1x4x256xf32>
    %cst_6 = arith.constant dense<0.000000e+00> : vector<1x256xf32>
    %9 = vector.multi_reduction <add>, %8, %cst_6 [1] : vector<1x4x256xf32> to vector<1x256xf32>
    %10 = vector.shape_cast %9 : vector<1x256xf32> to vector<1x1x256xf32>
    %11 = arith.mulf %4, %4 : vector<1x4x256xf32>
    %cst_7 = arith.constant dense<0.000000e+00> : vector<1x256xf32>
    %12 = vector.multi_reduction <add>, %11, %cst_7 [1] : vector<1x4x256xf32> to vector<1x256xf32>
    %13 = vector.shape_cast %12 : vector<1x256xf32> to vector<1x1x256xf32>
    %cst_8 = arith.constant 1.000000e-24 : f32
    %14 = vector.broadcast %cst_8 : f32 to vector<1x1x256xf32>
    %15 = arith.maximumf %10, %14 : vector<1x1x256xf32>
    %16 = math.rsqrt %15 : vector<1x1x256xf32>
    %cst_9 = arith.constant 1.000000e-24 : f32
    %17 = vector.broadcast %cst_9 : f32 to vector<1x1x256xf32>
    %18 = arith.maximumf %13, %17 : vector<1x1x256xf32>
    %19 = math.rsqrt %18 : vector<1x1x256xf32>
    %20 = arith.mulf %16, %19 : vector<1x1x256xf32>
    %c0_10 = arith.constant 0 : index
    %c0_11 = arith.constant 0 : index
    %c0_12 = arith.constant 0 : index
    %21 = vector.load %arg4[%c0_10, %c0_11, %c0_12] : memref<1x1x256xf32, #tpu.memory_space<vmem>>, vector<1x1x256xf32>
    %22 = arith.mulf %7, %20 : vector<1x1x256xf32>
    %23 = arith.addf %21, %22 : vector<1x1x256xf32>
    %c0_13 = arith.constant 0 : index
    %c0_14 = arith.constant 0 : index
    %c0_15 = arith.constant 0 : index
    %24 = vector.load %arg4[%c0_13, %c0_14, %c0_15] : memref<1x1x256xf32, #tpu.memory_space<vmem>>, vector<1x1x256xf32>
    tpu.vector_store %arg4[%c0_13, %c0_14, %c0_15], %23 {strides = array<i32>} : memref<1x1x256xf32, #tpu.memory_space<vmem>>, vector<1x1x256xf32>,
    return
  }
  func.func @transform_0(%arg0: i32, %arg1: i32) -> (i32, i32, i32) {
    %c0_i32 = arith.constant 0 : i32
    %c0_i32_0 = arith.constant 0 : i32
    return %arg0, %c0_i32, %arg1 : i32, i32, i32
  }
  func.func @transform_1(%arg0: i32, %arg1: i32) -> (i32, i32, i32) {
    %c0_i32 = arith.constant 0 : i32
    %c0_i32_0 = arith.constant 0 : i32
    return %arg0, %c0_i32, %arg1 : i32, i32, i32
  }
  func.func @transform_2(%arg0: i32, %arg1: i32) -> (i32, i32, i32) {
    %c0_i32 = arith.constant 0 : i32
    %c0_i32_0 = arith.constant 0 : i32
    %c0_i32_1 = arith.constant 0 : i32
    return %arg0, %c0_i32, %c0_i32_0 : i32, i32, i32
  }
}

</mosaic_0001>

<llo_original>
// kernel: tpu_custom_call.1
$region0: #{tpu_custom_call.1}
  #allocation0 [shape = 'u32[]', space=smem, size = 0x4, offset = 0x4, fixed_abs, tag = 'smem constant byte address 0x4 - core index']
  #allocation1 [shape = 'u32[144,128]{1,0:T(1,128)}', space=vmem, size = 0x12000, scoped, tag = 'internal scratch']
  %s0 = inlined_call_operand.hbm [shape: f32[2,4,256], index: 0, kind: input, shape index: {}]
  %s1 = inlined_call_operand.hbm [shape: f32[2,4,256], index: 1, kind: input, shape index: {}]
  %s2 = inlined_call_operand.hbm [shape: f32[2,1,256], index: 2, kind: output, shape index: {}]
  %s3 = sld [smem:[#allocation0]]
  $region53: #{tpu_custom_call.1} parent=0
    _
  %s5 = ssub.s32 1, %s3
  %s6 = scalar_select 0, %s5, %s3
  $region1: #{tpu_custom_call.1} parent=0
    #allocation2 [shape = 'u8[8192]{0}', space=vmem, size = 0x2000, scoped, tag = 'input window, operand 0']
    #allocation3 [shape = 's32[2]{0}', space=sflag, size = 0x8, scoped, tag = 'scoped memory for tpu_custom_call.1']
    #allocation4 [shape = 's32[2]{0}', space=sflag, size = 0x8, scoped, tag = 'scoped memory for tpu_custom_call.1']
    #allocation5 [shape = 'u8[8192]{0}', space=vmem, size = 0x2000, scoped, tag = 'input window, operand 1']
    #allocation6 [shape = 's32[2]{0}', space=sflag, size = 0x8, scoped, tag = 'scoped memory for tpu_custom_call.1']
    #allocation7 [shape = 'u8[2048]{0}', space=vmem, size = 0x800, scoped, tag = 'output window, operand 0']
    %7 = vsyncpa [#allocation3], 0
    %s8 = scalar_lea.sflag [#allocation3], 1
    %9 = vsyncpa %s8, 0
    %10 = vsyncpa [#allocation6], 0
    %s11 = scalar_lea.sflag [#allocation6], 1
    %12 = vsyncpa %s11, 0
    %13 = vsyncpa [#allocation4], 0
    %s14 = scalar_lea.sflag [#allocation4], 1
    %15 = vsyncpa %s14, 0
    loop: start=0, step=1, limit=4
    $region2: #{tpu_custom_call.1} parent=1 // loop_pre_header
      _
    $region3: #{tpu_custom_call.1} parent=1 // loop_header
      %s17 = sphi 0, %s21
      %p18 = scmp.ge.s32.totalorder %s17, 4
      %s24 = sphi 0, %s36
      %s25 = sphi 0, %s32
      %s26 = sphi 0, %s24
      %s27 = sphi 0, %s25
      %s28 = sphi 0, %s26
      %s29 = sphi 0, %s27
      %s41 = sphi 0, %s43
      %s44 = sphi 0, %s41
      %s45 = sphi 0, %s44
      %s61 = sphi 0, %s45
      %s69 = sphi 0, %s71
      %s72 = sphi 0, %s69
      %s73 = sphi 0, %s72
      %s89 = sphi 0, %s73
      %s95 = sphi 0, %s97
      %s98 = sphi 0, %s95
      %s99 = sphi 0, %s98
      %s115 = sphi 0, %s99
    $region4: #{tpu_custom_call.1} parent=1 // loop_header_branch
      %20 = sbr.rel (%p18) target = $region8
    $region5: #{tpu_custom_call.1} parent=1 // loop_body
      %s22 = ssub.s32 %s17, 1
      %s23 = ssub.s32 %s17, 2
      %s30 = sadd.s32 1, %s25
      %p31 = scmp.ge.s32.totalorder %s30, 1
      %s32 = scalar_select %p31, 0, %s30
      %s33 = sadd.s32 1, %s24
      %s34 = scalar_select %p31, %s33, %s24
      %p35 = scmp.ge.s32.totalorder %s34, 2
      %s36 = scalar_select %p35, 0, %s34
      %s37 = ssub.s32 %s24, %s36
      %s38 = ssub.s32 %s25, %s32
      %s39 = sor.u32 %s37, %s38
      %p40 = scmp.eq.s32.totalorder %s39, 0
      %s42 = sadd.s32 %s41, 1
      %s43 = scalar_select %p40, %s41, %s42
      %p46 = pneg %p40
      %p47 = scmp.eq.s32.totalorder %s17, 1
      %p48 = por %p46, %p47
      %p49 = scmp.ne.s32.totalorder %s41, %s44
      %p50 = scmp.eq.s32.totalorder %s17, 0
      %p51 = por %p49, %p50
      %p52 = scmp.ne.s32.totalorder %s41, %s44
      %p53 = scmp.eq.s32.totalorder %s22, 1
      %p54 = por %p52, %p53
      %p55 = scmp.ne.s32.totalorder %s44, %s45
      %p56 = scmp.eq.s32.totalorder %s22, 0
      %p57 = por %p55, %p56
      %p58 = scmp.ne.s32.totalorder %s44, %s45
      %p59 = scmp.eq.s32.totalorder %s23, 1
      %p60 = por %p58, %p59
      %p62 = scmp.ne.s32.totalorder %s45, %s61
      %p63 = scmp.eq.s32.totalorder %s23, 0
      %p64 = por %p62, %p63
      %s65 = ssub.s32 %s24, %s36
      %s66 = ssub.s32 %s25, %s32
      %s67 = sor.u32 %s65, %s66
      %p68 = scmp.eq.s32.totalorder %s67, 0
      %s70 = sadd.s32 %s69, 1
      %s71 = scalar_select %p68, %s69, %s70
      %p74 = pneg %p68
      %p75 = scmp.eq.s32.totalorder %s17, 1
      %p76 = por %p74, %p75
      %p77 = scmp.ne.s32.totalorder %s69, %s72
      %p78 = scmp.eq.s32.totalorder %s17, 0
      %p79 = por %p77, %p78
      %p80 = scmp.ne.s32.totalorder %s69, %s72
      %p81 = scmp.eq.s32.totalorder %s22, 1
      %p82 = por %p80, %p81
      %p83 = scmp.ne.s32.totalorder %s72, %s73
      %p84 = scmp.eq.s32.totalorder %s22, 0
      %p85 = por %p83, %p84
      %p86 = scmp.ne.s32.totalorder %s72, %s73
      %p87 = scmp.eq.s32.totalorder %s23, 1
      %p88 = por %p86, %p87
      %p90 = scmp.ne.s32.totalorder %s73, %s89
      %p91 = scmp.eq.s32.totalorder %s23, 0
      %p92 = por %p90, %p91
      %s93 = ssub.s32 %s24, %s36
      %p94 = scmp.eq.s32.totalorder %s93, 0
      %s96 = sadd.s32 %s95, 1
      %s97 = scalar_select %p94, %s95, %s96
      %p100 = pneg %p94
      %p101 = scmp.eq.s32.totalorder %s17, 1
      %p102 = por %p100, %p101
      %p103 = scmp.ne.s32.totalorder %s95, %s98
      %p104 = scmp.eq.s32.totalorder %s17, 0
      %p105 = por %p103, %p104
      %p106 = scmp.ne.s32.totalorder %s95, %s98
      %p107 = scmp.eq.s32.totalorder %s22, 1
      %p108 = por %p106, %p107
      %p109 = scmp.ne.s32.totalorder %s98, %s99
      %p110 = scmp.eq.s32.totalorder %s22, 0
      %p111 = por %p109, %p110
      %p112 = scmp.ne.s32.totalorder %s98, %s99
      %p113 = scmp.eq.s32.totalorder %s23, 1
      %p114 = por %p112, %p113
      %p116 = scmp.ne.s32.totalorder %s99, %s115
      %p117 = scmp.eq.s32.totalorder %s23, 0
      %p118 = por %p116, %p117
      %p119 = scmp.le.s32.totalorder 1, %s17
      %p120 = scmp.lt.s32.totalorder %s17, 3
      %p121 = pnand %p119, %p120
      %p122 = pneg %p121
      // Predicated region
      $region9: #{tpu_custom_call.1} parent=5 // pred_check
        _
      $region10: #{tpu_custom_call.1} parent=5 // pred_check_branch
        %124 = sbr.rel (%p121) target = $region12
      $region11: #{tpu_custom_call.1} parent=5 // pred_region
        %s125 = ssub.s32 %s17, 1
      $region12: #{tpu_custom_call.1} parent=5 // pred_fallthru
        _
      %p126 = scmp.lt.s32.totalorder %s17, 2
      // Predicated region
      $region13: #{tpu_custom_call.1} parent=5 // pred_check
        %p127 = pneg %p126
      $region14: #{tpu_custom_call.1} parent=5 // pred_check_branch
        %129 = sbr.rel (%p127) target = $region16
      $region15: #{tpu_custom_call.1} parent=5 // pred_region
        // Predicated region
        $region17: #{tpu_custom_call.1} parent=15 // pred_check
          %p130 = pneg %p51
        $region18: #{tpu_custom_call.1} parent=15 // pred_check_branch
          %132 = sbr.rel (%p130) target = $region20
        $region19: #{tpu_custom_call.1} parent=15 // pred_region
          %s133 = sand.u32 %s41, 1
          %s134 = scalar_lea.sflag [#allocation3], %s133
          %s135 = sand.u32 %s41, 1
          %s136 = smul.addr %s135, 8
          %s137 = scalar_lea.vmem [#allocation2], %s136
          %s138 = smul.u32 2, %s25
          %s140 = ssub.s32 128, 128
          %141 = vsyncadd %s134, %s140
          %s142 = smul.addr %s24, 2
          %s143 = sadd.s32 %s138, %s142
          %s144 = smul.addr %s143, 64
          %s145 = scalar_lea.hbm %s0, %s144
          %s147 = sshll.u32 %s137, 4
          %s148 = int_to_ptr.vmem [resolvable:$true] %s147
          %150 = dma.hbm_to_vmem [thread:$0]  %s145, 128, %s148, %s134
        $region20: #{tpu_custom_call.1} parent=15 // pred_fallthru
          _
        // Predicated region
        $region21: #{tpu_custom_call.1} parent=15 // pred_check
          %p151 = pneg %p79
        $region22: #{tpu_custom_call.1} parent=15 // pred_check_branch
          %153 = sbr.rel (%p151) target = $region24
        $region23: #{tpu_custom_call.1} parent=15 // pred_region
          %s154 = sand.u32 %s69, 1
          %s155 = scalar_lea.sflag [#allocation6], %s154
          %s156 = sand.u32 %s69, 1
          %s157 = smul.addr %s156, 8
          %s158 = scalar_lea.vmem [#allocation5], %s157
          %s159 = smul.u32 2, %s25
          %s161 = ssub.s32 128, 128
          %162 = vsyncadd %s155, %s161
          %s163 = smul.addr %s24, 2
          %s164 = sadd.s32 %s159, %s163
          %s165 = smul.addr %s164, 64
          %s166 = scalar_lea.hbm %s1, %s165
          %s168 = sshll.u32 %s158, 4
          %s169 = int_to_ptr.vmem [resolvable:$true] %s168
          %171 = dma.hbm_to_vmem [thread:$0]  %s166, 128, %s169, %s155
        $region24: #{tpu_custom_call.1} parent=15 // pred_fallthru
          _
      $region16: #{tpu_custom_call.1} parent=5 // pred_fallthru
        _
      %p172 = scmp.le.s32.totalorder 1, %s17
      %p173 = scmp.lt.s32.totalorder %s17, 3
      %p174 = pnand %p172, %p173
      %p175 = pneg %p174
      // Predicated region
      $region25: #{tpu_custom_call.1} parent=5 // pred_check
        _
      $region26: #{tpu_custom_call.1} parent=5 // pred_check_branch
        %177 = sbr.rel (%p174) target = $region28
      $region27: #{tpu_custom_call.1} parent=5 // pred_region
        %s178 = ssub.s32 %s17, 1
        %s179 = sand.u32 %s44, 1
        %s180 = scalar_lea.sflag [#allocation3], %s179
        %s181 = sand.u32 %s44, 1
        %s182 = smul.addr %s181, 8
        %s183 = scalar_lea.vmem [#allocation2], %s182
        // Predicated region
        $region29: #{tpu_custom_call.1} parent=27 // pred_check
          %p184 = pneg %p57
        $region30: #{tpu_custom_call.1} parent=27 // pred_check_branch
          %186 = sbr.rel (%p184) target = $region32
        $region31: #{tpu_custom_call.1} parent=27 // pred_region
          %187 = dma.done %s180, 128
        $region32: #{tpu_custom_call.1} parent=27 // pred_fallthru
          _
        %s188 = sand.u32 %s72, 1
        %s189 = scalar_lea.sflag [#allocation6], %s188
        %s190 = sand.u32 %s72, 1
        %s191 = smul.addr %s190, 8
        %s192 = scalar_lea.vmem [#allocation5], %s191
        // Predicated region
        $region33: #{tpu_custom_call.1} parent=27 // pred_check
          %p193 = pneg %p85
        $region34: #{tpu_custom_call.1} parent=27 // pred_check_branch
          %195 = sbr.rel (%p193) target = $region36
        $region35: #{tpu_custom_call.1} parent=27 // pred_region
          %196 = dma.done %s189, 128
        $region36: #{tpu_custom_call.1} parent=27 // pred_fallthru
          _
        %s197 = sand.u32 %s44, 1
        %s198 = scalar_lea.sflag [#allocation3], %s197
        %s199 = sand.u32 %s44, 1
        %s200 = smul.addr %s199, 8
        %s201 = scalar_lea.vmem [#allocation2], %s200
        %p202 = pneg %p57
        %p203 = pneg %p54
        %s204 = sand.u32 %s72, 1
        %s205 = scalar_lea.sflag [#allocation6], %s204
        %s206 = sand.u32 %s72, 1
        %s207 = smul.addr %s206, 8
        %s208 = scalar_lea.vmem [#allocation5], %s207
        %p209 = pneg %p85
        %p210 = pneg %p82
        %p211 = pneg %p111
        %p212 = pneg %p108
        %s213 = sand.u32 %s98, 1
        %s214 = scalar_lea.sflag [#allocation4], %s213
        %s215 = sand.u32 %s98, 1
        %s216 = smul.addr %s215, 2
        %s217 = scalar_lea.vmem [#allocation7], %s216
        %s218 = smul.u32 2, %s27
        %s219 = smul.u32 2, %s27
        %p220 = scmp.eq.s32.totalorder %s27, 0
        // Predicated region
        $region37: #{tpu_custom_call.1} parent=27 // pred_check
          %p221 = pneg %p220
        $region38: #{tpu_custom_call.1} parent=27 // pred_check_branch
          %223 = sbr.rel (%p221) target = $region40
        $region39: #{tpu_custom_call.1} parent=27 // pred_region
          %v224 = vlaneseq
          %vm225 = vcmp.ge.s32.totalorder %v224, 0
          %vm226 = vcmp.lt.s32.totalorder %v224, 256
          %vm227 = vmand %vm225, %vm226
          %228 = vst.msk [vmem:[%s217] sm:$0x3] %vm227, 0.0
        $region40: #{tpu_custom_call.1} parent=27 // pred_fallthru
          _
        %v229 = vld [vmem:[%s183] sm:$0xff]
        %v230 = vld [vmem:[%s192] sm:$0xff]
        %v231 = vmul.f32 %v229, %v230
        %v233 = vcombine.high %v231, %v231
        %vm235 = vcmask 1043456
        %v236 = vsel %vm235, %v231, 0.0
        %v237 = vrot.slane %v236, 4
        %v238 = vadd.f32 %v236, %v237
        %v239 = vrot.slane %v238, 2
        %v240 = vadd.f32 %v238, %v239
        %v241 = vrot.slane %v240, 1
        %v242 = vadd.f32 %v240, %v241
        %v243 = vsel %vm235, %v233, 0.0
        %v244 = vrot.slane %v243, 4
        %v245 = vadd.f32 %v243, %v244
        %v246 = vrot.slane %v245, 2
        %v247 = vadd.f32 %v245, %v246
        %v248 = vrot.slane %v247, 1
        %v249 = vadd.f32 %v247, %v248
        %v250 = vmul.f32 %v229, %v229
        %v252 = vcombine.high %v250, %v250
        %v254 = vsel %vm235, %v250, 0.0
        %v255 = vrot.slane %v254, 4
        %v256 = vadd.f32 %v254, %v255
        %v257 = vrot.slane %v256, 2
        %v258 = vadd.f32 %v256, %v257
        %v259 = vrot.slane %v258, 1
        %v260 = vadd.f32 %v258, %v259
        %v261 = vsel %vm235, %v252, 0.0
        %v262 = vrot.slane %v261, 4
        %v263 = vadd.f32 %v261, %v262
        %v264 = vrot.slane %v263, 2
        %v265 = vadd.f32 %v263, %v264
        %v266 = vrot.slane %v265, 1
        %v267 = vadd.f32 %v265, %v266
        %v268 = vmul.f32 %v230, %v230
        %v270 = vcombine.high %v268, %v268
        %v272 = vsel %vm235, %v268, 0.0
        %v273 = vrot.slane %v272, 4
        %v274 = vadd.f32 %v272, %v273
        %v275 = vrot.slane %v274, 2
        %v276 = vadd.f32 %v274, %v275
        %v277 = vrot.slane %v276, 1
        %v278 = vadd.f32 %v276, %v277
        %v279 = vsel %vm235, %v270, 0.0
        %v280 = vrot.slane %v279, 4
        %v281 = vadd.f32 %v279, %v280
        %v282 = vrot.slane %v281, 2
        %v283 = vadd.f32 %v281, %v282
        %v284 = vrot.slane %v283, 1
        %v285 = vadd.f32 %v283, %v284
        %v286 = vmax.f32 %v260, 1e-24
        %v287 = vmax.f32 %v267, 1e-24
        %v288 = vrsqrt.pop %v286
        %v289 = vrsqrt.pop %v287
        %v290 = vmax.f32 %v278, 1e-24
        %v291 = vmax.f32 %v285, 1e-24
        %v292 = vrsqrt.pop %v290
        %v293 = vrsqrt.pop %v291
        %v294 = vmul.f32 %v288, %v292
        %v295 = vmul.f32 %v289, %v293
        %v296 = vld [vmem:[%s217] sm:$0x3]
        %v297 = vmul.f32 %v242, %v294
        %v298 = vmul.f32 %v249, %v295
        %v301 = vcombine.low %v297, %v298
        %v303 = vunpack.c.l.s4 1966171168
        %v304 = vunpack.c.0.s8 %v303
        %v305 = vlaneseq
        %v306 = vshrl.u32 %v305, 7
        %v307 = vsub.s32 %v304, %v306
        %v308 = vrot.slane %v301, %v307
        %v310 = vunpack.c.l.s4 1966171168
        %v311 = vunpack.c.0.s8 %v310
        %v312 = vlaneseq
        %v313 = vshrl.u32 %v312, 7
        %v314 = vsub.s32 %v311, %v313
        %v315 = vrot.slane %v308, %v314
        %v317 = vadd.f32 %v296, %v315
        %v318 = vlaneseq
        %vm319 = vcmp.ge.s32.totalorder %v318, 0
        %vm320 = vcmp.lt.s32.totalorder %v318, 256
        %vm321 = vmand %vm319, %vm320
        %322 = vst.msk [vmem:[%s217] sm:$0x3] %vm321, %v317
        %s323 = sand.u32 %s98, 1
        %s324 = scalar_lea.sflag [#allocation4], %s323
        %s325 = sand.u32 %s98, 1
        %s326 = smul.addr %s325, 2
        %s327 = scalar_lea.vmem [#allocation7], %s326
        // Predicated region
        $region41: #{tpu_custom_call.1} parent=27 // pred_check
          %p328 = pneg %p108
        $region42: #{tpu_custom_call.1} parent=27 // pred_check_branch
          %330 = sbr.rel (%p328) target = $region44
        $region43: #{tpu_custom_call.1} parent=27 // pred_region
          %s332 = ssub.s32 32, 32
          %333 = vsyncadd %s324, %s332
          %s334 = smul.addr %s26, 2
          %s335 = smul.addr %s334, 16
          %s336 = scalar_lea.hbm %s2, %s335
          %s338 = sshll.u32 %s327, 4
          %s339 = int_to_ptr.vmem [resolvable:$true] %s338
          %341 = dma.vmem_to_hbm [thread:$0]  %s339, 32, %s336, %s324
        $region44: #{tpu_custom_call.1} parent=27 // pred_fallthru
          _
      $region28: #{tpu_custom_call.1} parent=5 // pred_fallthru
        _
      %p342 = scmp.le.s32.totalorder 2, %s17
      // Predicated region
      $region45: #{tpu_custom_call.1} parent=5 // pred_check
        %p343 = pneg %p342
      $region46: #{tpu_custom_call.1} parent=5 // pred_check_branch
        %345 = sbr.rel (%p343) target = $region48
      $region47: #{tpu_custom_call.1} parent=5 // pred_region
        %s346 = ssub.s32 %s17, 2
        // Predicated region
        $region49: #{tpu_custom_call.1} parent=47 // pred_check
          %p347 = pneg %p114
        $region50: #{tpu_custom_call.1} parent=47 // pred_check_branch
          %349 = sbr.rel (%p347) target = $region52
        $region51: #{tpu_custom_call.1} parent=47 // pred_region
          %s350 = sand.u32 %s99, 1
          %s351 = scalar_lea.sflag [#allocation4], %s350
          %s352 = sand.u32 %s99, 1
          %s353 = smul.addr %s352, 2
          %s354 = scalar_lea.vmem [#allocation7], %s353
          %355 = dma.done %s351, 32
        $region52: #{tpu_custom_call.1} parent=47 // pred_fallthru
          _
      $region48: #{tpu_custom_call.1} parent=5 // pred_fallthru
        _
    $region6: #{tpu_custom_call.1} parent=1 // loop_footer
      %s21 = sadd.s32 1, %s17
    $region7: #{tpu_custom_call.1} parent=1 // loop_footer_branch
      %16 = sbr.rel target = $region3
    $region8: #{tpu_custom_call.1} parent=1 // loop_exit
      _
    %356 = vsyncpa [#allocation3], 1
    %s357 = scalar_lea.sflag [#allocation3], 1
    %358 = vsyncpa %s357, 1
    %359 = vsyncpa [#allocation6], 1
    %s360 = scalar_lea.sflag [#allocation6], 1
    %361 = vsyncpa %s360, 1
    %362 = vsyncpa [#allocation4], 1
    %s363 = scalar_lea.sflag [#allocation4], 1
    %364 = vsyncpa %s363, 1

</llo_original>
